<compile_context>
chip_gen: v7x
topology: tpu7x:2x2x1
jax: 0.10.0
libtpu: 0.0.40
codegen_flags: <defaults>
</compile_context>

<pallas_src>
import functools

import jax
import jax.numpy as jnp
from jax import lax
from jax.experimental import pallas as pl
from jax.experimental.pallas import tpu as pltpu


def _round_up(x, m):
    return ((x + m - 1) // m) * m


def _bert_output_kernel(x_ref, w_ref, b_ref, res_ref, gamma_ref, beta_ref,
                        o_ref, *, eps, h_valid, matmul_dtype):
    # Cast activations for the MXU inside the kernel (free VPU filler) so the
    # wrapper does not add an un-fused HBM cast pass over x.
    x = x_ref[...]
    if matmul_dtype is not None and x.dtype != jnp.dtype(matmul_dtype):
        x = x.astype(matmul_dtype)

    # Dense: (tm, I) @ (I, Hp) -> (tm, Hp), accumulate in f32 on the MXU.
    h = jnp.dot(x, w_ref[...], preferred_element_type=jnp.float32)
    h = h + b_ref[...].astype(jnp.float32)          # bias, broadcast (1, Hp)
    # Dropout: eval-mode nn.Dropout is the identity.
    # TODO(synk): training-mode dropout (pltpu.prng_random_bits mask) not implemented.
    h = h + res_ref[...].astype(jnp.float32)        # residual add

    # LayerNorm over the *real* hidden width h_valid. Padded columns (if any)
    # are exactly zero by construction (zero-padded w / b / residual), so no
    # pre-mean mask is needed; only `centered` must be re-masked before var.
    # Matches torch.nn.LayerNorm: biased variance, eps inside the sqrt.
    h_total = h.shape[-1]
    inv_n = 1.0 / float(h_valid)
    mean = jnp.sum(h, axis=-1, keepdims=True) * inv_n
    centered = h - mean
    if h_valid != h_total:                          # static Python branch
        col = lax.broadcasted_iota(jnp.int32, h.shape, 1)
        centered = jnp.where(col < h_valid, centered, 0.0)
    var = jnp.sum(centered * centered, axis=-1, keepdims=True) * inv_n
    inv = lax.rsqrt(var + eps)
    out = (centered * inv * gamma_ref[...].astype(jnp.float32)
           + beta_ref[...].astype(jnp.float32))
    o_ref[...] = out.astype(o_ref.dtype)


def bert_output(hidden_states, input_tensor, w, b, gamma, beta,
                *, eps=1e-12, tm=None, matmul_dtype=jnp.bfloat16,
                out_dtype=None):
    """hidden_states: [B, S, I], input_tensor: [B, S, H], w: [I, H] (x @ w + b).

    out_dtype defaults to input_tensor.dtype (semantic parity with torch). On
    HBM-bound parts (v6e) passing out_dtype=jnp.bfloat16 halves the output
    stream if the surrounding model tolerates it.
    """
    B, S, I = hidden_states.shape
    H = input_tensor.shape[-1]
    M = B * S
    if out_dtype is None:
        out_dtype = input_tensor.dtype

    # No wrapper-side casts/pads of the big streamed tensors (x, residual):
    # reshapes are free, the bf16 cast of x happens inside the kernel.
    x2 = hidden_states.reshape(M, I)
    r2 = input_tensor.reshape(M, H)

    if matmul_dtype is not None:
        w = w.astype(matmul_dtype)   # small & grid-invariant; keep off the row path

    # Pad the hidden dim to a multiple of 128 so output/residual stores are
    # lane-dense (unmasked vst). For BERT-class H (768/1024) this is a no-op.
    Hp = _round_up(H, 128)
    if Hp != H:
        w = jnp.pad(w, ((0, 0), (0, Hp - H)))
        r2 = jnp.pad(r2, ((0, 0), (0, Hp - H)))
        b = jnp.pad(b, (0, Hp - H))
        gamma = jnp.pad(gamma, (0, Hp - H))
        beta = jnp.pad(beta, (0, Hp - H))
    b2 = b.reshape(1, Hp).astype(jnp.float32)
    g2 = gamma.reshape(1, Hp).astype(jnp.float32)
    be2 = beta.reshape(1, Hp).astype(jnp.float32)

    x_item = jnp.dtype(x2.dtype).itemsize
    w_item = jnp.dtype(w.dtype).itemsize
    r_item = jnp.dtype(r2.dtype).itemsize
    o_item = jnp.dtype(out_dtype).itemsize

    def _footprint(t):
        # double-buffered streamed tiles + single-buffered (Buffered(1))
        # grid-invariant operands + f32 (t, Hp) LN/matmul intermediates.
        return (2 * t * I * x_item          # x tile
                + 2 * t * Hp * r_item       # residual tile
                + 2 * t * Hp * o_item       # output tile
                + 1 * I * Hp * w_item       # resident weight (single copy)
                + 3 * Hp * 4                # bias / gamma / beta
                + 4 * t * Hp * 4)           # h / centered / out temporaries

    # Generation-aware VMEM capacity (v5e/v6e: 128 MiB, v7x: 64 MiB per TC).
    try:
        vmem_cap = int(pltpu.get_tpu_info().vmem_capacity_bytes)
    except Exception:
        vmem_cap = 64 << 20                 # conservative fallback (v7x-safe)
    budget = (vmem_cap * 7) // 10
    tm_cap = 1024 if vmem_cap >= (100 << 20) else 512

    # Row-tile alignment: sublane multiple of the streamed dtypes.
    packed = any(jnp.dtype(d).itemsize < 4 for d in (x2.dtype, r2.dtype, out_dtype))
    row_align = 16 if packed else 8

    if tm is None:
        tm = min(tm_cap, _round_up(M, row_align))
        while tm > row_align and _footprint(tm) > budget:
            tm = max(row_align, tm // 2)
        # Align to full MXU passes when there are enough rows
        # (256 rows also covers v5e's 128-high MXU).
        if tm >= 256:
            tm = (tm // 256) * 256
        elif tm >= 128 and M >= 128:
            tm = (tm // 128) * 128
        # v7x has 2 TensorCores sharing the "parallel" grid axis: make sure
        # there are at least 2 grid steps so neither core idles.
        if pl.cdiv(M, tm) < 2 and M > row_align:
            tm = _round_up(pl.cdiv(M, 2), row_align)
    tm = max(row_align, min(tm, _round_up(M, row_align)))
    # TODO(synk): if the full [I, Hp] weight + tiles still exceed VMEM (huge I
    # in f32), add an inner "arbitrary" K grid axis with an f32 accumulator
    # scratch; not needed for BERT-class sizes in bf16.

    num_steps = pl.cdiv(M, tm)              # ragged last block handled by Pallas

    vmem_limit = int(min(max(_footprint(tm) * 5 // 4, 32 << 20),
                         vmem_cap - (8 << 20)))
    cost = pl.CostEstimate(
        flops=2 * M * I * Hp,
        transcendentals=0,
        bytes_accessed=(M * I * x_item + I * Hp * w_item
                        + M * Hp * r_item + M * Hp * o_item),
    )

    kernel = functools.partial(_bert_output_kernel, eps=eps, h_valid=H,
                               matmul_dtype=matmul_dtype)
    out = pl.pallas_call(
        kernel,
        out_shape=jax.ShapeDtypeStruct((M, Hp), out_dtype),
        grid_spec=pltpu.PrefetchScalarGridSpec(
            num_scalar_prefetch=0,
            grid=(num_steps,),
            in_specs=[
                pl.BlockSpec((tm, I), lambda i: (i, 0)),      # activations tile
                pl.BlockSpec((I, Hp), lambda i: (0, 0),       # dense weight (resident,
                             pipeline_mode=pl.Buffered(1)),   #  single-buffered)
                pl.BlockSpec((1, Hp), lambda i: (0, 0),       # dense bias
                             pipeline_mode=pl.Buffered(1)),
                pl.BlockSpec((tm, Hp), lambda i: (i, 0)),     # residual tile
                pl.BlockSpec((1, Hp), lambda i: (0, 0),       # LN gamma
                             pipeline_mode=pl.Buffered(1)),
                pl.BlockSpec((1, Hp), lambda i: (0, 0),       # LN beta
                             pipeline_mode=pl.Buffered(1)),
            ],
            out_specs=pl.BlockSpec((tm, Hp), lambda i: (i, 0)),
        ),
        compiler_params=pltpu.CompilerParams(
            dimension_semantics=("parallel",),   # shards across v7x's 2 TCs
            vmem_limit_bytes=vmem_limit,
        ),
        cost_estimate=cost,
    )(x2, w, b2, r2, g2, be2)

    if Hp != H:
        out = out[:, :H]
    return out.reshape(B, S, H)


if __name__ == "__main__":
    # Small synthetic config with lane-dense dims: intermediate=256, hidden=128.
    B, S, I, H = 2, 8, 256, 128
    key = jax.random.PRNGKey(0)
    k1, k2, k3, k4, k5 = jax.random.split(key, 5)

    hidden_states = jax.random.normal(k1, (B, S, I), dtype=jnp.float32)
    input_tensor = jax.random.normal(k2, (B, S, H), dtype=jnp.float32)

    # Deterministic parameter init (shapes from BertOutput.__init__).
    w = jax.random.normal(k3, (I, H), dtype=jnp.float32) * 0.02   # dense weight [I, H]
    bias = jax.random.normal(k4, (H,), dtype=jnp.float32) * 0.02  # dense bias
    gamma = 1.0 + 0.01 * jax.random.normal(k5, (H,), dtype=jnp.float32)  # LN weight
    beta = jnp.zeros((H,), dtype=jnp.float32)                     # LN bias
    eps = 1e-12

    out = bert_output(hidden_states, input_tensor, w, bias, gamma, beta, eps=eps)
    out = jax.block_until_ready(out)

    # Pure-JAX reference (dropout in eval mode == identity). The kernel feeds
    # the MXU bf16 operands, so the reference rounds x/w to bf16 first and then
    # does the matmul exactly in f32 — differences are accumulation-order only.
    xr = hidden_states.astype(jnp.bfloat16).astype(jnp.float32)
    wr = w.astype(jnp.bfloat16).astype(jnp.float32)
    h_ref = jnp.einsum("bsi,ih->bsh", xr, wr,
                       precision=lax.Precision.HIGHEST) + bias
    h_ref = h_ref + input_tensor
    mean = jnp.mean(h_ref, axis=-1, keepdims=True)
    var = jnp.mean((h_ref - mean) ** 2, axis=-1, keepdims=True)
    ref = (h_ref - mean) * lax.rsqrt(var + eps) * gamma + beta

    assert out.shape == (B, S, H)
    assert jnp.allclose(out, ref, atol=1e-3, rtol=1e-3), "mismatch vs reference"
    print("KERNEL_OK")
</pallas_src>

<mosaic_0001>
module attributes {stable_mosaic.version = 11 : i64} {
  func.func @_bert_output_kernel(%arg0: i32, %arg1: memref<8x256xf32, #tpu.memory_space<vmem>>, %arg2: memref<256x128xbf16, #tpu.memory_space<vmem>>, %arg3: memref<1x128xf32, #tpu.memory_space<vmem>>, %arg4: memref<8x128xf32, #tpu.memory_space<vmem>>, %arg5: memref<1x128xf32, #tpu.memory_space<vmem>>, %arg6: memref<1x128xf32, #tpu.memory_space<vmem>>, %arg7: memref<8x128xf32, #tpu.memory_space<vmem>>) attributes {dimension_semantics = [#tpu.dimension_semantics<parallel>], iteration_bounds = array<i64: 2>, scalar_prefetch = 0 : i64, scratch_operands = 0 : i64, tpu.core_type = #tpu.core_type<tc>, window_params = [{transform_indices = @transform_0, window_bounds = array<i64: 8, 256>}, {pipeline_mode = #tpu.pipeline_mode<synchronous>, transform_indices = @transform_1, window_bounds = array<i64: 256, 128>}, {pipeline_mode = #tpu.pipeline_mode<synchronous>, transform_indices = @transform_2, window_bounds = array<i64: 1, 128>}, {transform_indices = @transform_3, window_bounds = array<i64: 8, 128>}, {pipeline_mode = #tpu.pipeline_mode<synchronous>, transform_indices = @transform_4, window_bounds = array<i64: 1, 128>}, {pipeline_mode = #tpu.pipeline_mode<synchronous>, transform_indices = @transform_5, window_bounds = array<i64: 1, 128>}, {transform_indices = @transform_6, window_bounds = array<i64: 8, 128>}]} {
    %c0 = arith.constant 0 : index
    %c0_0 = arith.constant 0 : index
    %0 = vector.load %arg1[%c0, %c0_0] : memref<8x256xf32, #tpu.memory_space<vmem>>, vector<8x256xf32>
    %1 = arith.truncf %0 : vector<8x256xf32> to vector<8x256xbf16>
    %c0_1 = arith.constant 0 : index
    %c0_2 = arith.constant 0 : index
    %2 = vector.load %arg2[%c0_1, %c0_2] : memref<256x128xbf16, #tpu.memory_space<vmem>>, vector<256x128xbf16>
    %cst = arith.constant dense<0.000000e+00> : vector<8x128xf32>
    %3 = tpu.matmul %1, %2, %cst {dimension_numbers = #tpu.dot_dimension_numbers<[1], [0], [0], [1], [0, 0, 1, 1], [], []>} : vector<8x256xbf16>, vector<256x128xbf16>, vector<8x128xf32> -> vector<8x128xf32>
    %c0_3 = arith.constant 0 : index
    %c0_4 = arith.constant 0 : index
    %4 = vector.load %arg3[%c0_3, %c0_4] : memref<1x128xf32, #tpu.memory_space<vmem>>, vector<1x128xf32>
    %5 = vector.broadcast %4 : vector<1x128xf32> to vector<8x128xf32>
    %6 = arith.addf %3, %5 : vector<8x128xf32>
    %c0_5 = arith.constant 0 : index
    %c0_6 = arith.constant 0 : index
    %7 = vector.load %arg4[%c0_5, %c0_6] : memref<8x128xf32, #tpu.memory_space<vmem>>, vector<8x128xf32>
    %8 = arith.addf %6, %7 : vector<8x128xf32>
    %cst_7 = arith.constant dense<0.000000e+00> : vector<8xf32>
    %9 = vector.multi_reduction <add>, %8, %cst_7 [1] : vector<8x128xf32> to vector<8xf32>
    %10 = vector.shape_cast %9 : vector<8xf32> to vector<8x1xf32>
    %cst_8 = arith.constant 7.812500e-03 : f32
    %11 = vector.broadcast %cst_8 : f32 to vector<8x1xf32>
    %12 = arith.mulf %10, %11 : vector<8x1xf32>
    %13 = vector.broadcast %12 : vector<8x1xf32> to vector<8x128xf32>
    %14 = arith.subf %8, %13 : vector<8x128xf32>
    %15 = arith.mulf %14, %14 : vector<8x128xf32>
    %cst_9 = arith.constant dense<0.000000e+00> : vector<8xf32>
    %16 = vector.multi_reduction <add>, %15, %cst_9 [1] : vector<8x128xf32> to vector<8xf32>
    %17 = vector.shape_cast %16 : vector<8xf32> to vector<8x1xf32>
    %cst_10 = arith.constant 7.812500e-03 : f32
    %18 = vector.broadcast %cst_10 : f32 to vector<8x1xf32>
    %19 = arith.mulf %17, %18 : vector<8x1xf32>
    %cst_11 = arith.constant 9.99999996E-13 : f32
    %20 = vector.broadcast %cst_11 : f32 to vector<8x1xf32>
    %21 = arith.addf %19, %20 : vector<8x1xf32>
    %22 = math.rsqrt %21 : vector<8x1xf32>
    %23 = vector.broadcast %22 : vector<8x1xf32> to vector<8x128xf32>
    %24 = arith.mulf %14, %23 : vector<8x128xf32>
    %c0_12 = arith.constant 0 : index
    %c0_13 = arith.constant 0 : index
    %25 = vector.load %arg5[%c0_12, %c0_13] : memref<1x128xf32, #tpu.memory_space<vmem>>, vector<1x128xf32>
    %26 = vector.broadcast %25 : vector<1x128xf32> to vector<8x128xf32>
    %27 = arith.mulf %24, %26 : vector<8x128xf32>
    %c0_14 = arith.constant 0 : index
    %c0_15 = arith.constant 0 : index
    %28 = vector.load %arg6[%c0_14, %c0_15] : memref<1x128xf32, #tpu.memory_space<vmem>>, vector<1x128xf32>
    %29 = vector.broadcast %28 : vector<1x128xf32> to vector<8x128xf32>
    %30 = arith.addf %27, %29 : vector<8x128xf32>
    %c0_16 = arith.constant 0 : index
    %c0_17 = arith.constant 0 : index
    %31 = vector.load %arg7[%c0_16, %c0_17] : memref<8x128xf32, #tpu.memory_space<vmem>>, vector<8x128xf32>
    tpu.vector_store %arg7[%c0_16, %c0_17], %30 {strides = array<i32>} : memref<8x128xf32, #tpu.memory_space<vmem>>, vector<8x128xf32>,
    return
  }
  func.func @transform_0(%arg0: i32) -> (i32, i32) {
    %c0_i32 = arith.constant 0 : i32
    %c0_i32_0 = arith.constant 0 : i32
    return %arg0, %c0_i32 : i32, i32
  }
  func.func @transform_1(%arg0: i32) -> (i32, i32) {
    %c0_i32 = arith.constant 0 : i32
    %c0_i32_0 = arith.constant 0 : i32
    %c0_i32_1 = arith.constant 0 : i32
    return %c0_i32, %c0_i32_0 : i32, i32
  }
  func.func @transform_2(%arg0: i32) -> (i32, i32) {
    %c0_i32 = arith.constant 0 : i32
    %c0_i32_0 = arith.constant 0 : i32
    %c0_i32_1 = arith.constant 0 : i32
    return %c0_i32, %c0_i32_0 : i32, i32
  }
  func.func @transform_3(%arg0: i32) -> (i32, i32) {
    %c0_i32 = arith.constant 0 : i32
    %c0_i32_0 = arith.constant 0 : i32
    return %arg0, %c0_i32 : i32, i32
  }
  func.func @transform_4(%arg0: i32) -> (i32, i32) {
    %c0_i32 = arith.constant 0 : i32
    %c0_i32_0 = arith.constant 0 : i32
    %c0_i32_1 = arith.constant 0 : i32
    return %c0_i32, %c0_i32_0 : i32, i32
  }
  func.func @transform_5(%arg0: i32) -> (i32, i32) {
    %c0_i32 = arith.constant 0 : i32
    %c0_i32_0 = arith.constant 0 : i32
    %c0_i32_1 = arith.constant 0 : i32
    return %c0_i32, %c0_i32_0 : i32, i32
  }
  func.func @transform_6(%arg0: i32) -> (i32, i32) {
    %c0_i32 = arith.constant 0 : i32
    %c0_i32_0 = arith.constant 0 : i32
    return %arg0, %c0_i32 : i32, i32
  }
}

</mosaic_0001>

<llo_original>
// kernel: tpu_custom_call.1
$region0: #{tpu_custom_call.1}
  #allocation0 [shape = 'u32[]', space=smem, size = 0x4, offset = 0x4, fixed_abs, tag = 'smem constant byte address 0x4 - core index']
  #allocation1 [shape = 'u32[144,128]{1,0:T(1,128)}', space=vmem, size = 0x12000, scoped, tag = 'internal scratch']
  %s0 = inlined_call_operand.hbm [shape: f32[16,256], index: 0, kind: input, shape index: {}]
  %s1 = inlined_call_operand.hbm [shape: bf16[256,128], index: 1, kind: input, shape index: {}]
  %s2 = inlined_call_operand.vmem [shape: f32[1,128], index: 2, kind: input, shape index: {}]
  %s3 = inlined_call_operand.hbm [shape: f32[16,128], index: 3, kind: input, shape index: {}]
  %s4 = inlined_call_operand.vmem [shape: f32[1,128], index: 4, kind: input, shape index: {}]
  %s5 = inlined_call_operand.vmem [shape: f32[1,128], index: 5, kind: input, shape index: {}]
  %s6 = inlined_call_operand.hbm [shape: f32[16,128], index: 6, kind: output, shape index: {}]
  %s7 = sld [smem:[#allocation0]]
  $region69: #{tpu_custom_call.1} parent=0
    _
  %s9 = ssub.s32 1, %s7
  %s10 = scalar_select 0, %s9, %s7
  $region1: #{tpu_custom_call.1} parent=0
    #allocation2 [shape = 'u8[16384]{0}', space=vmem, size = 0x4000, scoped, tag = 'input window, operand 0']
    #allocation3 [shape = 's32[2]{0}', space=sflag, size = 0x8, scoped, tag = 'scoped memory for tpu_custom_call.1']
    #allocation4 [shape = 's32[2]{0}', space=sflag, size = 0x8, scoped, tag = 'scoped memory for tpu_custom_call.1']
    #allocation5 [shape = 'u8[65536]{0}', space=vmem, size = 0x10000, scoped, tag = 'input window, operand 1, single buffered']
    #allocation6 [shape = 's32[1]{0}', space=sflag, size = 0x4, scoped, tag = 'scoped memory for tpu_custom_call.1']
    #allocation7 [shape = 'u8[8192]{0}', space=vmem, size = 0x2000, scoped, tag = 'input window, operand 3']
    #allocation8 [shape = 'u8[8192]{0}', space=vmem, size = 0x2000, scoped, tag = 'output window, operand 0']
    %11 = vsyncpa [#allocation3], 0
    %s12 = scalar_lea.sflag [#allocation3], 1
    %13 = vsyncpa %s12, 0
    %14 = vsyncpa [#allocation6], 0
    %15 = vsyncpa [#allocation4], 0
    %s16 = scalar_lea.sflag [#allocation4], 1
    %17 = vsyncpa %s16, 0
    loop: start=0, step=1, limit=4
    $region2: #{tpu_custom_call.1} parent=1 // loop_pre_header
      _
    $region3: #{tpu_custom_call.1} parent=1 // loop_header
      %s19 = sphi 0, %s23
      %p20 = scmp.ge.s32.totalorder %s19, 4
      %s29 = sphi 0, %s31
      %s32 = sphi 0, %s29
      %s33 = sphi 0, %s32
      %s49 = sphi 0, %s33
      %s53 = sphi 0, %s53
      %s55 = sphi 0, %s53
      %s56 = sphi 0, %s55
      %s70 = sphi 0, %s56
      %s74 = sphi 0, %s74
      %s76 = sphi 0, %s74
      %s77 = sphi 0, %s76
      %s91 = sphi 0, %s77
      %s97 = sphi 0, %s99
      %s100 = sphi 0, %s97
      %s101 = sphi 0, %s100
      %s117 = sphi 0, %s101
      %s121 = sphi 0, %s121
      %s123 = sphi 0, %s121
      %s124 = sphi 0, %s123
      %s138 = sphi 0, %s124
      %s142 = sphi 0, %s142
      %s144 = sphi 0, %s142
      %s145 = sphi 0, %s144
      %s159 = sphi 0, %s145
      %s165 = sphi 0, %s167
      %s168 = sphi 0, %s165
      %s169 = sphi 0, %s168
      %s185 = sphi 0, %s169
    $region4: #{tpu_custom_call.1} parent=1 // loop_header_branch
      %22 = sbr.rel (%p20) target = $region8
    $region5: #{tpu_custom_call.1} parent=1 // loop_body
      %s24 = ssub.s32 %s19, 1
      %s25 = ssub.s32 %s19, 2
      %s26 = sadd.s32 %s19, 1
      %s27 = ssub.s32 %s19, %s26
      %p28 = scmp.eq.s32.totalorder %s27, 0
      %s30 = sadd.s32 %s29, 1
      %s31 = scalar_select %p28, %s29, %s30
      %p34 = pneg %p28
      %p35 = scmp.eq.s32.totalorder %s19, 1
      %p36 = por %p34, %p35
      %p37 = scmp.ne.s32.totalorder %s29, %s32
      %p38 = scmp.eq.s32.totalorder %s19, 0
      %p39 = por %p37, %p38
      %p40 = scmp.ne.s32.totalorder %s29, %s32
      %p41 = scmp.eq.s32.totalorder %s24, 1
      %p42 = por %p40, %p41
      %p43 = scmp.ne.s32.totalorder %s32, %s33
      %p44 = scmp.eq.s32.totalorder %s24, 0
      %p45 = por %p43, %p44
      %p46 = scmp.ne.s32.totalorder %s32, %s33
      %p47 = scmp.eq.s32.totalorder %s25, 1
      %p48 = por %p46, %p47
      %p50 = scmp.ne.s32.totalorder %s33, %s49
      %p51 = scmp.eq.s32.totalorder %s25, 0
      %p52 = por %p50, %p51
      %s54 = sadd.s32 %s53, 1
      %p57 = scmp.eq.s32.totalorder %s19, 1
      %p58 = scmp.ne.s32.totalorder %s53, %s55
      %p59 = scmp.eq.s32.totalorder %s19, 0
      %p60 = por %p58, %p59
      %p61 = scmp.ne.s32.totalorder %s53, %s55
      %p62 = scmp.eq.s32.totalorder %s24, 1
      %p63 = por %p61, %p62
      %p64 = scmp.ne.s32.totalorder %s55, %s56
      %p65 = scmp.eq.s32.totalorder %s24, 0
      %p66 = por %p64, %p65
      %p67 = scmp.ne.s32.totalorder %s55, %s56
      %p68 = scmp.eq.s32.totalorder %s25, 1
      %p69 = por %p67, %p68
      %p71 = scmp.ne.s32.totalorder %s56, %s70
      %p72 = scmp.eq.s32.totalorder %s25, 0
      %p73 = por %p71, %p72
      %s75 = sadd.s32 %s74, 1
      %p78 = scmp.eq.s32.totalorder %s19, 1
      %p79 = scmp.ne.s32.totalorder %s74, %s76
      %p80 = scmp.eq.s32.totalorder %s19, 0
      %p81 = por %p79, %p80
      %p82 = scmp.ne.s32.totalorder %s74, %s76
      %p83 = scmp.eq.s32.totalorder %s24, 1
      %p84 = por %p82, %p83
      %p85 = scmp.ne.s32.totalorder %s76, %s77
      %p86 = scmp.eq.s32.totalorder %s24, 0
      %p87 = por %p85, %p86
      %p88 = scmp.ne.s32.totalorder %s76, %s77
      %p89 = scmp.eq.s32.totalorder %s25, 1
      %p90 = por %p88, %p89
      %p92 = scmp.ne.s32.totalorder %s77, %s91
      %p93 = scmp.eq.s32.totalorder %s25, 0
      %p94 = por %p92, %p93
      %s95 = ssub.s32 %s19, %s26
      %p96 = scmp.eq.s32.totalorder %s95, 0
      %s98 = sadd.s32 %s97, 1
      %s99 = scalar_select %p96, %s97, %s98
      %p102 = pneg %p96
      %p103 = scmp.eq.s32.totalorder %s19, 1
      %p104 = por %p102, %p103
      %p105 = scmp.ne.s32.totalorder %s97, %s100
      %p106 = scmp.eq.s32.totalorder %s19, 0
      %p107 = por %p105, %p106
      %p108 = scmp.ne.s32.totalorder %s97, %s100
      %p109 = scmp.eq.s32.totalorder %s24, 1
      %p110 = por %p108, %p109
      %p111 = scmp.ne.s32.totalorder %s100, %s101
      %p112 = scmp.eq.s32.totalorder %s24, 0
      %p113 = por %p111, %p112
      %p114 = scmp.ne.s32.totalorder %s100, %s101
      %p115 = scmp.eq.s32.totalorder %s25, 1
      %p116 = por %p114, %p115
      %p118 = scmp.ne.s32.totalorder %s101, %s117
      %p119 = scmp.eq.s32.totalorder %s25, 0
      %p120 = por %p118, %p119
      %s122 = sadd.s32 %s121, 1
      %p125 = scmp.eq.s32.totalorder %s19, 1
      %p126 = scmp.ne.s32.totalorder %s121, %s123
      %p127 = scmp.eq.s32.totalorder %s19, 0
      %p128 = por %p126, %p127
      %p129 = scmp.ne.s32.totalorder %s121, %s123
      %p130 = scmp.eq.s32.totalorder %s24, 1
      %p131 = por %p129, %p130
      %p132 = scmp.ne.s32.totalorder %s123, %s124
      %p133 = scmp.eq.s32.totalorder %s24, 0
      %p134 = por %p132, %p133
      %p135 = scmp.ne.s32.totalorder %s123, %s124
      %p136 = scmp.eq.s32.totalorder %s25, 1
      %p137 = por %p135, %p136
      %p139 = scmp.ne.s32.totalorder %s124, %s138
      %p140 = scmp.eq.s32.totalorder %s25, 0
      %p141 = por %p139, %p140
      %s143 = sadd.s32 %s142, 1
      %p146 = scmp.eq.s32.totalorder %s19, 1
      %p147 = scmp.ne.s32.totalorder %s142, %s144
      %p148 = scmp.eq.s32.totalorder %s19, 0
      %p149 = por %p147, %p148
      %p150 = scmp.ne.s32.totalorder %s142, %s144
      %p151 = scmp.eq.s32.totalorder %s24, 1
      %p152 = por %p150, %p151
      %p153 = scmp.ne.s32.totalorder %s144, %s145
      %p154 = scmp.eq.s32.totalorder %s24, 0
      %p155 = por %p153, %p154
      %p156 = scmp.ne.s32.totalorder %s144, %s145
      %p157 = scmp.eq.s32.totalorder %s25, 1
      %p158 = por %p156, %p157
      %p160 = scmp.ne.s32.totalorder %s145, %s159
      %p161 = scmp.eq.s32.totalorder %s25, 0
      %p162 = por %p160, %p161
      %s163 = ssub.s32 %s19, %s26
      %p164 = scmp.eq.s32.totalorder %s163, 0
      %s166 = sadd.s32 %s165, 1
      %s167 = scalar_select %p164, %s165, %s166
      %p170 = pneg %p164
      %p171 = scmp.eq.s32.totalorder %s19, 1
      %p172 = por %p170, %p171
      %p173 = scmp.ne.s32.totalorder %s165, %s168
      %p174 = scmp.eq.s32.totalorder %s19, 0
      %p175 = por %p173, %p174
      %p176 = scmp.ne.s32.totalorder %s165, %s168
      %p177 = scmp.eq.s32.totalorder %s24, 1
      %p178 = por %p176, %p177
      %p179 = scmp.ne.s32.totalorder %s168, %s169
      %p180 = scmp.eq.s32.totalorder %s24, 0
      %p181 = por %p179, %p180
      %p182 = scmp.ne.s32.totalorder %s168, %s169
      %p183 = scmp.eq.s32.totalorder %s25, 1
      %p184 = por %p182, %p183
      %p186 = scmp.ne.s32.totalorder %s169, %s185
      %p187 = scmp.eq.s32.totalorder %s25, 0
      %p188 = por %p186, %p187
      %p189 = scmp.le.s32.totalorder 1, %s19
      %p190 = scmp.lt.s32.totalorder %s19, 3
      %p191 = pnand %p189, %p190
      %p192 = pneg %p191
      // Predicated region
      $region9: #{tpu_custom_call.1} parent=5 // pred_check
        _
      $region10: #{tpu_custom_call.1} parent=5 // pred_check_branch
        %194 = sbr.rel (%p191) target = $region12
      $region11: #{tpu_custom_call.1} parent=5 // pred_region
        %s195 = ssub.s32 %s19, 1
        // Predicated region
        $region13: #{tpu_custom_call.1} parent=11 // pred_check
          %p196 = pneg %p66
        $region14: #{tpu_custom_call.1} parent=11 // pred_check_branch
          %198 = sbr.rel (%p196) target = $region16
        $region15: #{tpu_custom_call.1} parent=11 // pred_region
          %s200 = ssub.s32 2048, 2048
          %201 = vsyncadd [#allocation6], %s200
          %s202 = sshll.u32 [#allocation5], 4
          %s203 = int_to_ptr.vmem [resolvable:$true] %s202
          %208 = dma.hbm_to_vmem [thread:$0]  %s1, 2048, %s203, [#allocation6], 64, 64, 4
        $region16: #{tpu_custom_call.1} parent=11 // pred_fallthru
          _
        // Predicated region
        $region17: #{tpu_custom_call.1} parent=11 // pred_check
          %p209 = pneg %p87
        $region18: #{tpu_custom_call.1} parent=11 // pred_check_branch
          %211 = sbr.rel (%p209) target = $region20
        $region19: #{tpu_custom_call.1} parent=11 // pred_region
          _
        $region20: #{tpu_custom_call.1} parent=11 // pred_fallthru
          _
        // Predicated region
        $region21: #{tpu_custom_call.1} parent=11 // pred_check
          %p212 = pneg %p134
        $region22: #{tpu_custom_call.1} parent=11 // pred_check_branch
          %214 = sbr.rel (%p212) target = $region24
        $region23: #{tpu_custom_call.1} parent=11 // pred_region
          _
        $region24: #{tpu_custom_call.1} parent=11 // pred_fallthru
          _
        // Predicated region
        $region25: #{tpu_custom_call.1} parent=11 // pred_check
          %p215 = pneg %p155
        $region26: #{tpu_custom_call.1} parent=11 // pred_check_branch
          %217 = sbr.rel (%p215) target = $region28
        $region27: #{tpu_custom_call.1} parent=11 // pred_region
          _
        $region28: #{tpu_custom_call.1} parent=11 // pred_fallthru
          _
      $region12: #{tpu_custom_call.1} parent=5 // pred_fallthru
        _
      %p218 = scmp.lt.s32.totalorder %s19, 2
      // Predicated region
      $region29: #{tpu_custom_call.1} parent=5 // pred_check
        %p219 = pneg %p218
      $region30: #{tpu_custom_call.1} parent=5 // pred_check_branch
        %221 = sbr.rel (%p219) target = $region32
      $region31: #{tpu_custom_call.1} parent=5 // pred_region
        // Predicated region
        $region33: #{tpu_custom_call.1} parent=31 // pred_check
          %p222 = pneg %p39
        $region34: #{tpu_custom_call.1} parent=31 // pred_check_branch
          %224 = sbr.rel (%p222) target = $region36
        $region35: #{tpu_custom_call.1} parent=31 // pred_region
          %s225 = sand.u32 %s19, 1
          %s226 = scalar_lea.sflag [#allocation3], %s225
          %s227 = sand.u32 %s29, 1
          %s228 = smul.addr %s227, 16
          %s229 = scalar_lea.vmem [#allocation2], %s228
          %s231 = ssub.s32 256, 256
          %232 = vsyncadd %s226, %s231
          %s233 = smul.addr %s19, 2
          %s234 = smul.addr %s233, 128
          %s235 = scalar_lea.hbm %s0, %s234
          %s237 = sshll.u32 %s229, 4
          %s238 = int_to_ptr.vmem [resolvable:$true] %s237
          %240 = dma.hbm_to_vmem [thread:$0]  %s235, 256, %s238, %s226
        $region36: #{tpu_custom_call.1} parent=31 // pred_fallthru
          _
        // Predicated region
        $region37: #{tpu_custom_call.1} parent=31 // pred_check
          %p241 = pneg %p107
        $region38: #{tpu_custom_call.1} parent=31 // pred_check_branch
          %243 = sbr.rel (%p241) target = $region40
        $region39: #{tpu_custom_call.1} parent=31 // pred_region
          %s244 = sand.u32 %s19, 1
          %s245 = scalar_lea.sflag [#allocation3], %s244
          %s246 = sand.u32 %s97, 1
          %s247 = smul.addr %s246, 8
          %s248 = scalar_lea.vmem [#allocation7], %s247
          %s250 = ssub.s32 128, 128
          %251 = vsyncadd %s245, %s250
          %s252 = smul.addr %s19, 128
          %s253 = scalar_lea.hbm %s3, %s252
          %s255 = sshll.u32 %s248, 4
          %s256 = int_to_ptr.vmem [resolvable:$true] %s255
          %258 = dma.hbm_to_vmem [thread:$0]  %s253, 128, %s256, %s245
        $region40: #{tpu_custom_call.1} parent=31 // pred_fallthru
          _
      $region32: #{tpu_custom_call.1} parent=5 // pred_fallthru
        _
      %p259 = scmp.le.s32.totalorder 1, %s19
      %p260 = scmp.lt.s32.totalorder %s19, 3
      %p261 = pnand %p259, %p260
      %p262 = pneg %p261
      // Predicated region
      $region41: #{tpu_custom_call.1} parent=5 // pred_check
        _
      $region42: #{tpu_custom_call.1} parent=5 // pred_check_branch
        %264 = sbr.rel (%p261) target = $region44
      $region43: #{tpu_custom_call.1} parent=5 // pred_region
        %s265 = ssub.s32 %s19, 1
        %s266 = sand.u32 %s24, 1
        %s267 = scalar_lea.sflag [#allocation3], %s266
        %s268 = sand.u32 %s32, 1
        %s269 = smul.addr %s268, 16
        %s270 = scalar_lea.vmem [#allocation2], %s269
        // Predicated region
        $region45: #{tpu_custom_call.1} parent=43 // pred_check
          %p271 = pneg %p45
        $region46: #{tpu_custom_call.1} parent=43 // pred_check_branch
          %273 = sbr.rel (%p271) target = $region48
        $region47: #{tpu_custom_call.1} parent=43 // pred_region
          %274 = dma.done %s267, 256
        $region48: #{tpu_custom_call.1} parent=43 // pred_fallthru
          _
        // Predicated region
        $region49: #{tpu_custom_call.1} parent=43 // pred_check
          %p275 = pneg %p66
        $region50: #{tpu_custom_call.1} parent=43 // pred_check_branch
          %277 = sbr.rel (%p275) target = $region52
        $region51: #{tpu_custom_call.1} parent=43 // pred_region
          %278 = dma.done [#allocation6], 2048
        $region52: #{tpu_custom_call.1} parent=43 // pred_fallthru
          _
        %s279 = sand.u32 %s24, 1
        %s280 = scalar_lea.sflag [#allocation3], %s279
        %s281 = sand.u32 %s100, 1
        %s282 = smul.addr %s281, 8
        %s283 = scalar_lea.vmem [#allocation7], %s282
        // Predicated region
        $region53: #{tpu_custom_call.1} parent=43 // pred_check
          %p284 = pneg %p113
        $region54: #{tpu_custom_call.1} parent=43 // pred_check_branch
          %286 = sbr.rel (%p284) target = $region56
        $region55: #{tpu_custom_call.1} parent=43 // pred_region
          %287 = dma.done %s280, 128
        $region56: #{tpu_custom_call.1} parent=43 // pred_fallthru
          _
        %s288 = sand.u32 %s24, 1
        %s289 = scalar_lea.sflag [#allocation3], %s288
        %s290 = sand.u32 %s32, 1
        %s291 = smul.addr %s290, 16
        %s292 = scalar_lea.vmem [#allocation2], %s291
        %p293 = pneg %p45
        %p294 = pneg %p42
        %p295 = pneg %p66
        %p296 = pneg %p63
        %p297 = pneg %p87
        %p298 = pneg %p84
        %s299 = sand.u32 %s24, 1
        %s300 = scalar_lea.sflag [#allocation3], %s299
        %s301 = sand.u32 %s100, 1
        %s302 = smul.addr %s301, 8
        %s303 = scalar_lea.vmem [#allocation7], %s302
        %p304 = pneg %p113
        %p305 = pneg %p110
        %p306 = pneg %p134
        %p307 = pneg %p131
        %p308 = pneg %p155
        %p309 = pneg %p152
        %p310 = pneg %p181
        %p311 = pneg %p178
        %s312 = sand.u32 %s168, 1
        %s313 = scalar_lea.sflag [#allocation4], %s312
        %s314 = sand.u32 %s168, 1
        %s315 = smul.addr %s314, 8
        %s316 = scalar_lea.vmem [#allocation8], %s315
        %v318 = vld [vmem:[%s270] sm:$0xff]
        %v319 = vld [vmem:[%s270 + $0x8] sm:$0xff]
        %v320 = vpack.c.bf16 %v318, %v318
        %v321 = vpack.c.bf16 %v319, %v319
        %v322 = vld [vmem:[#allocation5] sm:$0xf]
        %v323 = vld [vmem:[#allocation5 + $0x4] sm:$0xf]
        %v324 = vld [vmem:[#allocation5 + $0x8] sm:$0xf]
        %v325 = vld [vmem:[#allocation5 + $0xc] sm:$0xf]
        %v326 = vld [vmem:[#allocation5 + $0x10] sm:$0xf]
        %v327 = vld [vmem:[#allocation5 + $0x14] sm:$0xf]
        %v328 = vld [vmem:[#allocation5 + $0x18] sm:$0xf]
        %v329 = vld [vmem:[#allocation5 + $0x1c] sm:$0xf]
        %v330 = vld [vmem:[#allocation5 + $0x20] sm:$0xf]
        %v331 = vld [vmem:[#allocation5 + $0x24] sm:$0xf]
        %v332 = vld [vmem:[#allocation5 + $0x28] sm:$0xf]
        %v333 = vld [vmem:[#allocation5 + $0x2c] sm:$0xf]
        %v334 = vld [vmem:[#allocation5 + $0x30] sm:$0xf]
        %v335 = vld [vmem:[#allocation5 + $0x34] sm:$0xf]
        %v336 = vld [vmem:[#allocation5 + $0x38] sm:$0xf]
        %v337 = vld [vmem:[#allocation5 + $0x3c] sm:$0xf]
        %v338 = vld [vmem:[#allocation5 + $0x40] sm:$0xf]
        %v339 = vld [vmem:[#allocation5 + $0x44] sm:$0xf]
        %v340 = vld [vmem:[#allocation5 + $0x48] sm:$0xf]
        %v341 = vld [vmem:[#allocation5 + $0x4c] sm:$0xf]
        %v342 = vld [vmem:[#allocation5 + $0x50] sm:$0xf]
        %v343 = vld [vmem:[#allocation5 + $0x54] sm:$0xf]
        %v344 = vld [vmem:[#allocation5 + $0x58] sm:$0xf]
        %v345 = vld [vmem:[#allocation5 + $0x5c] sm:$0xf]
        %v346 = vld [vmem:[#allocation5 + $0x60] sm:$0xf]
        %v347 = vld [vmem:[#allocation5 + $0x64] sm:$0xf]
        %v348 = vld [vmem:[#allocation5 + $0x68] sm:$0xf]
        %v349 = vld [vmem:[#allocation5 + $0x6c] sm:$0xf]
        %v350 = vld [vmem:[#allocation5 + $0x70] sm:$0xf]
        %v351 = vld [vmem:[#allocation5 + $0x74] sm:$0xf]
        %v352 = vld [vmem:[#allocation5 + $0x78] sm:$0xf]
        %v353 = vld [vmem:[#allocation5 + $0x7c] sm:$0xf]
        %v354 = vld [vmem:[%s2] sm:$0x1]
        %v356 = vlaneseq
        %v357 = vshrl.u32 %v356, 7
        %v358 = vsub.s32 0, %v357
        %v359 = vrot.slane %v354, %v358
        %v393 = vunpack.c.l.b16 %v322
        %v394 = vunpack.c.l.b16 %v323
        %v395 = vunpack.c.l.b16 %v324
        %v396 = vunpack.c.l.b16 %v325
        %v397 = vunpack.c.l.b16 %v326
        %v398 = vunpack.c.l.b16 %v327
        %v399 = vunpack.c.l.b16 %v328
        %v400 = vunpack.c.l.b16 %v329
        %v401 = vunpack.c.l.b16 %v330
        %v402 = vunpack.c.l.b16 %v331
        %v403 = vunpack.c.l.b16 %v332
        %v404 = vunpack.c.l.b16 %v333
        %v405 = vunpack.c.l.b16 %v334
        %v406 = vunpack.c.l.b16 %v335
        %v407 = vunpack.c.l.b16 %v336
        %v408 = vunpack.c.l.b16 %v337
        %v409 = vunpack.c.l.b16 %v338
        %v410 = vunpack.c.l.b16 %v339
        %v411 = vunpack.c.l.b16 %v340
        %v412 = vunpack.c.l.b16 %v341
        %v413 = vunpack.c.l.b16 %v342
        %v414 = vunpack.c.l.b16 %v343
        %v415 = vunpack.c.l.b16 %v344
        %v416 = vunpack.c.l.b16 %v345
        %v417 = vunpack.c.l.b16 %v346
        %v418 = vunpack.c.l.b16 %v347
        %v419 = vunpack.c.l.b16 %v348
        %v420 = vunpack.c.l.b16 %v349
        %v421 = vunpack.c.l.b16 %v350
        %v422 = vunpack.c.l.b16 %v351
        %v423 = vunpack.c.l.b16 %v352
        %v424 = vunpack.c.l.b16 %v353
        %v425 = vpack.c.b16 %v394, %v393
        %v426 = vpack.c.b16 %v396, %v395
        %v427 = vpack.c.b16 %v398, %v397
        %v428 = vpack.c.b16 %v400, %v399
        %v429 = vpack.c.b16 %v402, %v401
        %v430 = vpack.c.b16 %v404, %v403
        %v431 = vpack.c.b16 %v406, %v405
        %v432 = vpack.c.b16 %v408, %v407
        %v433 = vpack.c.b16 %v410, %v409
        %v434 = vpack.c.b16 %v412, %v411
        %v435 = vpack.c.b16 %v414, %v413
        %v436 = vpack.c.b16 %v416, %v415
        %v437 = vpack.c.b16 %v418, %v417
        %v438 = vpack.c.b16 %v420, %v419
        %v439 = vpack.c.b16 %v422, %v421
        %v440 = vpack.c.b16 %v424, %v423
        %457 = vmatprep.subr.bf16.mxu0 0
        %458 = vmatpush1.bf16.msra.mxu0 %v425
        %459 = vmatprep.subr.bf16.mxu0 0
        %460 = vmatpush1.bf16.msra.mxu0 %v426
        %461 = vmatprep.subr.bf16.mxu0 0
        %462 = vmatpush1.bf16.msra.mxu0 %v427
        %463 = vmatprep.subr.bf16.mxu0 0
        %464 = vmatpush1.bf16.msra.mxu0 %v428
        %465 = vmatprep.subr.bf16.mxu0 0
        %466 = vmatpush1.bf16.msra.mxu0 %v429
        %467 = vmatprep.subr.bf16.mxu0 0
        %468 = vmatpush1.bf16.msra.mxu0 %v430
        %469 = vmatprep.subr.bf16.mxu0 0
        %470 = vmatpush1.bf16.msra.mxu0 %v431
        %471 = vmatprep.subr.bf16.mxu0 0
        %472 = vmatpush1.bf16.msra.mxu0 %v432
        %473 = vmatprep.subr.bf16.mxu0 0
        %474 = vmatpush1.bf16.msra.mxu0 %v433
        %475 = vmatprep.subr.bf16.mxu0 0
        %476 = vmatpush1.bf16.msra.mxu0 %v434
        %477 = vmatprep.subr.bf16.mxu0 0
        %478 = vmatpush1.bf16.msra.mxu0 %v435
        %479 = vmatprep.subr.bf16.mxu0 0
        %480 = vmatpush1.bf16.msra.mxu0 %v436
        %481 = vmatprep.subr.bf16.mxu0 0
        %482 = vmatpush1.bf16.msra.mxu0 %v437
        %483 = vmatprep.subr.bf16.mxu0 0
        %484 = vmatpush1.bf16.msra.mxu0 %v438
        %485 = vmatprep.subr.bf16.mxu0 0
        %486 = vmatpush1.bf16.msra.mxu0 %v439
        %487 = vmatprep.subr.bf16.mxu0 0
        %488 = vmatpush1.bf16.msra.mxu0 %v440
        %489 = vmatprep.mubr.bf16.mxu0 %v321
        %490 = vmatmul.mubr.bf16.gmra.mrb[0].mxu0 %v320
        %v491 = vpop.f32.mrb[0].mxu0
        %v492 = vadd.f32 %v359, %v491
        %v493 = vpop.f32.mrb[0].mxu0
        %v494 = vpop.f32.mrb[0].mxu0
        %v495 = vpop.f32.mrb[0].mxu0
        %496 = vdwg.mxu0
        %v497 = vld [vmem:[%s283] sm:$0xff]
        %v498 = vadd.f32 %v492, %v497
        %499 = vadd.xlane.f32.xlu0 %v498
        %v500 = vpop.xlane.xlu0 %499
        %v501 = vmul.f32 %v500, 0.0078125
        %v502 = vsub.f32 %v498, %v501
        %v503 = vmul.f32 %v502, %v502
        %504 = vadd.xlane.f32.xlu0 %v503
        %v505 = vpop.xlane.xlu0 %504
        %v506 = vmul.f32 %v505, 0.0078125
        %v507 = vadd.f32 %v506, 1e-12
        %v508 = vrsqrt.pop %v507
        %v509 = vmul.f32 %v502, %v508
        %v510 = vld [vmem:[%s4] sm:$0x1]
        %v512 = vlaneseq
        %v513 = vshrl.u32 %v512, 7
        %v514 = vsub.s32 0, %v513
        %v515 = vrot.slane %v510, %v514
        %v517 = vmul.f32 %v509, %v515
        %v518 = vld [vmem:[%s5] sm:$0x1]
        %v520 = vlaneseq
        %v521 = vshrl.u32 %v520, 7
        %v522 = vsub.s32 0, %v521
        %v523 = vrot.slane %v518, %v522
        %v525 = vadd.f32 %v517, %v523
        %526 = vst [vmem:[%s316] sm:$0xff] %v525
        %s527 = sand.u32 %s168, 1
        %s528 = scalar_lea.sflag [#allocation4], %s527
        %s529 = sand.u32 %s168, 1
        %s530 = smul.addr %s529, 8
        %s531 = scalar_lea.vmem [#allocation8], %s530
        // Predicated region
        $region57: #{tpu_custom_call.1} parent=43 // pred_check
          %p532 = pneg %p178
        $region58: #{tpu_custom_call.1} parent=43 // pred_check_branch
          %534 = sbr.rel (%p532) target = $region60
        $region59: #{tpu_custom_call.1} parent=43 // pred_region
          %s536 = ssub.s32 128, 128
          %537 = vsyncadd %s528, %s536
          %s538 = smul.addr %s24, 128
          %s539 = scalar_lea.hbm %s6, %s538
          %s541 = sshll.u32 %s531, 4
          %s542 = int_to_ptr.vmem [resolvable:$true] %s541
          %544 = dma.vmem_to_hbm [thread:$0]  %s542, 128, %s539, %s528
        $region60: #{tpu_custom_call.1} parent=43 // pred_fallthru
          _
      $region44: #{tpu_custom_call.1} parent=5 // pred_fallthru
        _
      %p545 = scmp.le.s32.totalorder 2, %s19
      // Predicated region
      $region61: #{tpu_custom_call.1} parent=5 // pred_check
        %p546 = pneg %p545
      $region62: #{tpu_custom_call.1} parent=5 // pred_check_branch
        %548 = sbr.rel (%p546) target = $region64
      $region63: #{tpu_custom_call.1} parent=5 // pred_region
        %s549 = ssub.s32 %s19, 2
        // Predicated region
        $region65: #{tpu_custom_call.1} parent=63 // pred_check
          %p550 = pneg %p184
        $region66: #{tpu_custom_call.1} parent=63 // pred_check_branch
          %552 = sbr.rel (%p550) target = $region68
        $region67: #{tpu_custom_call.1} parent=63 // pred_region
          %s553 = sand.u32 %s169, 1
          %s554 = scalar_lea.sflag [#allocation4], %s553
          %s555 = sand.u32 %s169, 1
          %s556 = smul.addr %s555, 8
          %s557 = scalar_lea.vmem [#allocation8], %s556
          %558 = dma.done %s554, 128
        $region68: #{tpu_custom_call.1} parent=63 // pred_fallthru
          _
      $region64: #{tpu_custom_call.1} parent=5 // pred_fallthru
        _
    $region6: #{tpu_custom_call.1} parent=1 // loop_footer
      %s23 = sadd.s32 1, %s19
    $region7: #{tpu_custom_call.1} parent=1 // loop_footer_branch
      %18 = sbr.rel target = $region3
    $region8: #{tpu_custom_call.1} parent=1 // loop_exit
      _
    %559 = vsyncpa [#allocation3], 1
    %s560 = scalar_lea.sflag [#allocation3], 1
    %561 = vsyncpa %s560, 1
    %562 = vsyncpa [#allocation6], 1
    %563 = vsyncpa [#allocation4], 1
    %s564 = scalar_lea.sflag [#allocation4], 1
    %565 = vsyncpa %s564, 1

</llo_original>
